<compile_context>
chip_gen: v5e
topology: v5e:2x2
jax: 0.10.0
libtpu: 0.0.40
codegen_flags: <defaults>
</compile_context>

<pallas_src>
import jax
import jax.numpy as jnp
from jax.experimental import pallas as pl
from jax.experimental.pallas import tpu as pltpu


# ---------------------------------------------------------------------------
# Kernels
# ---------------------------------------------------------------------------

def _make_tiled_kernel(c0, c1, c2, sublane_pack):
    """Main-path kernel: input refs are (c_i, ts), output ref is (c_total, ts)."""
    aligned = (c0 % sublane_pack == 0) and ((c0 + c1) % sublane_pack == 0)

    def kernel(s_ref, x0_ref, x1_ref, x2_ref, o_ref):
        # s_ref: SMEM (3,) f32 pre-normalized scales (computed once in the wrapper).
        s0, s1, s2 = s_ref[0], s_ref[1], s_ref[2]
        # Multiply in f32 regardless of input dtype (v5e has no bf16 VALU; kernel is
        # HBM-bound everywhere anyway); cast exactly once on the store path.
        y0 = x0_ref[...].astype(jnp.float32) * s0
        y1 = x1_ref[...].astype(jnp.float32) * s1
        y2 = x2_ref[...].astype(jnp.float32) * s2
        if aligned:
            # Sublane-aligned channel offsets: three unmasked sliced stores.
            o_ref[0:c0, :] = y0.astype(o_ref.dtype)
            o_ref[c0:c0 + c1, :] = y1.astype(o_ref.dtype)
            o_ref[c0 + c1:c0 + c1 + c2, :] = y2.astype(o_ref.dtype)
        else:
            # Unaligned offsets: assemble the whole block in-register (XLU sublane
            # shuffle) and issue a single unmasked full-block store.
            o_ref[...] = jnp.concatenate([y0, y1, y2], axis=0).astype(o_ref.dtype)

    return kernel


def _small_hw_kernel(s_ref, x0_ref, x1_ref, x2_ref, o_ref):
    """Small pyramid-level kernel: C*H*W folded onto the lane axis.

    Input refs are (1, c_i*hw), output ref is (1, c_total*hw); the channel concat
    becomes a lane concat so the output stays lane-dense even when H*W < 128.
    """
    s0, s1, s2 = s_ref[0], s_ref[1], s_ref[2]
    o_ref[...] = jnp.concatenate(
        [x0_ref[...].astype(jnp.float32) * s0,
         x1_ref[...].astype(jnp.float32) * s1,
         x2_ref[...].astype(jnp.float32) * s2],
        axis=-1,
    ).astype(o_ref.dtype)


# ---------------------------------------------------------------------------
# Tile policy
# ---------------------------------------------------------------------------

def _pick_spatial_tile(hw, n, per_lane_bytes, in_itemsize, *,
                       budget_bytes=6 * 1024 * 1024,
                       min_grid_steps=8,
                       hard_cap_bytes=12 * 1024 * 1024):
    """Choose the H*W (lane) tile for the main path.

    Priorities: ~few-MiB double-buffered (in+out) blocks per grid step, at least
    `min_grid_steps` total grid steps (v7x has 2 TensorCores sharing HBM), per-channel
    DMA segments >= 2 KiB, lane tiles that are multiples of 128 unless full-extent,
    and a hard per-step VMEM cap for pathological channel counts.
    """
    # DMA-segment floor: each channel row of a block is a separate strided HBM
    # segment of ts*itemsize bytes; keep it >= 2 KiB (512 lanes f32 / 1024 bf16).
    ts_floor = max(128, 2048 // max(1, in_itemsize))

    # Pipeline-budget cap (double-buffered inputs + output per grid step).
    ts_budget = max(1, budget_bytes // (2 * per_lane_bytes))

    # Load-balance cap: want n * num_spatial_tiles >= min_grid_steps.
    tiles_wanted = max(1, -(-min_grid_steps // max(1, n)))
    ts_split = -(-hw // tiles_wanted)

    ts = min(hw, ts_budget, ts_split)
    ts = max(ts, min(ts_floor, hw))        # the segment floor wins over both caps

    # Hard per-step VMEM cap; may override the floor when c_total*itemsize is huge.
    ts = min(ts, max(128, hard_cap_bytes // (2 * per_lane_bytes)))

    if ts >= hw:
        return hw                          # full extent is always a legal lane size
    return max(128, (ts // 128) * 128)     # otherwise lane tile must be 128-aligned


# ---------------------------------------------------------------------------
# Wrapper
# ---------------------------------------------------------------------------

def bifpn_concat3(w, x0, x1, x2, *, spatial_tile=None):
    """Pallas implementation of BiFPN_Concat3.forward([x0, x1, x2]) (NCHW, concat on C)."""
    n, c0, h, wd = x0.shape
    c1, c2 = x1.shape[1], x2.shape[1]
    assert x1.shape == (n, c1, h, wd), x1.shape
    assert x2.shape == (n, c2, h, wd), x2.shape
    assert x0.dtype == x1.dtype == x2.dtype
    c_total = c0 + c1 + c2
    hw = h * wd

    in_dtype = x0.dtype
    # PyTorch type promotion: f32 weight * bf16/f16 x -> f32 output; f32 stays f32.
    out_dtype = jnp.promote_types(in_dtype, jnp.float32)
    in_isz = jnp.dtype(in_dtype).itemsize
    out_isz = jnp.dtype(out_dtype).itemsize

    # Normalize the weights once in the wrapper (3 scalar ops) -> SMEM scales.
    w32 = jnp.asarray(w, jnp.float32)
    scales = w32 / (jnp.sum(w32) + jnp.float32(1e-4))

    total_elems = n * c_total * hw
    cost = pl.CostEstimate(
        flops=total_elems,                                # one multiply per output element
        transcendentals=0,
        bytes_accessed=total_elems * (in_isz + out_isz),  # read every input, write output
    )
    smem_spec = pl.BlockSpec(memory_space=pltpu.MemorySpace.SMEM)

    # ---- Small pyramid level (H*W < 128): fold C*H*W onto the lane axis. ------------
    if hw < 128:
        out_flat = pl.pallas_call(
            _small_hw_kernel,
            out_shape=jax.ShapeDtypeStruct((n, c_total * hw), out_dtype),
            grid=(n,),
            in_specs=[
                smem_spec,
                pl.BlockSpec((1, c0 * hw), lambda b: (b, 0)),
                pl.BlockSpec((1, c1 * hw), lambda b: (b, 0)),
                pl.BlockSpec((1, c2 * hw), lambda b: (b, 0)),
            ],
            out_specs=pl.BlockSpec((1, c_total * hw), lambda b: (b, 0)),
            compiler_params=pltpu.CompilerParams(
                dimension_semantics=("parallel",),
                vmem_limit_bytes=16 * 1024 * 1024,
            ),
            cost_estimate=cost,
        )(scales,
          x0.reshape(n, c0 * hw), x1.reshape(n, c1 * hw), x2.reshape(n, c2 * hw))
        return out_flat.reshape(n, c_total, h, wd)

    # ---- Main path: lane-dense (N, C, H*W), grid over (batch, H*W tiles). -----------
    per_lane_bytes = c_total * (in_isz + out_isz)
    if spatial_tile is None:
        ts = _pick_spatial_tile(hw, n, per_lane_bytes, in_isz)
    else:
        ts = int(spatial_tile)
    grid = (n, pl.cdiv(hw, ts))

    def idx_map(bn, bs):
        return (bn, 0, bs)

    sublane_pack = 8 * max(1, 4 // out_isz)        # f32: 8, bf16: 16, int8/fp8: 32
    kernel = _make_tiled_kernel(c0, c1, c2, sublane_pack)

    # Double-buffered (inputs + output) blocks per grid step plus headroom; never
    # request more than 32 MiB (v7x's scoped-VMEM-safe ceiling).
    vmem_needed = 2 * ts * per_lane_bytes
    vmem_limit = int(min(32 * 1024 * 1024,
                         max(16 * 1024 * 1024, vmem_needed + 4 * 1024 * 1024)))

    out_flat = pl.pallas_call(
        kernel,
        out_shape=jax.ShapeDtypeStruct((n, c_total, hw), out_dtype),
        grid=grid,
        in_specs=[
            smem_spec,
            pl.BlockSpec((pl.Squeezed(), c0, ts), idx_map),
            pl.BlockSpec((pl.Squeezed(), c1, ts), idx_map),
            pl.BlockSpec((pl.Squeezed(), c2, ts), idx_map),
        ],
        out_specs=pl.BlockSpec((pl.Squeezed(), c_total, ts), idx_map),
        compiler_params=pltpu.CompilerParams(
            dimension_semantics=("parallel", "parallel"),
            vmem_limit_bytes=vmem_limit,
        ),
        cost_estimate=cost,
    )(scales, x0.reshape(n, c0, hw), x1.reshape(n, c1, hw), x2.reshape(n, c2, hw))

    return out_flat.reshape(n, c_total, h, wd)


def bifpn_concat3_ref(w, x0, x1, x2):
    w32 = jnp.asarray(w, jnp.float32)
    weight = w32 / (jnp.sum(w32) + jnp.float32(1e-4))
    return jnp.concatenate(
        [weight[0] * x0, weight[1] * x1, weight[2] * x2], axis=1)


if __name__ == "__main__":
    key = jax.random.PRNGKey(0)
    k0, k1, k2, kw = jax.random.split(key, 4)

    # Small NCHW shapes consistent with the module (concat along channels).
    x0 = jax.random.normal(k0, (2, 4, 16, 16), dtype=jnp.float32)
    x1 = jax.random.normal(k1, (2, 4, 16, 16), dtype=jnp.float32)
    x2 = jax.random.normal(k2, (2, 4, 16, 16), dtype=jnp.float32)

    # Parameter init matching nn.Parameter(torch.ones(3)), perturbed so the
    # normalization path is actually exercised.
    w = jnp.ones((3,), dtype=jnp.float32) + 0.1 * jax.random.normal(kw, (3,))

    ref = bifpn_concat3_ref(w, x0, x1, x2)

    # 1) Default tile policy (full H*W tile at this small size).
    out = jax.block_until_ready(bifpn_concat3(w, x0, x1, x2))
    assert out.shape == (2, 12, 16, 16), out.shape
    assert out.dtype == ref.dtype, (out.dtype, ref.dtype)
    assert jnp.allclose(out, ref, atol=1e-6, rtol=1e-6)

    # 2) Forced spatial tiling (exercises the multi-step pipelined grid path that
    #    matters at real BiFPN feature-map sizes).
    out_tiled = jax.block_until_ready(bifpn_concat3(w, x0, x1, x2, spatial_tile=128))
    assert jnp.allclose(out_tiled, ref, atol=1e-6, rtol=1e-6)

    # 3) Small pyramid level (H*W < 128): C*H*W folded onto the lane axis.
    y0 = jax.random.normal(k0, (2, 4, 8, 8), dtype=jnp.float32)
    y1 = jax.random.normal(k1, (2, 4, 8, 8), dtype=jnp.float32)
    y2 = jax.random.normal(k2, (2, 4, 8, 8), dtype=jnp.float32)
    ref_s = bifpn_concat3_ref(w, y0, y1, y2)
    out_s = jax.block_until_ready(bifpn_concat3(w, y0, y1, y2))
    assert out_s.shape == (2, 12, 8, 8), out_s.shape
    assert jnp.allclose(out_s, ref_s, atol=1e-6, rtol=1e-6)

    print("KERNEL_OK")
</pallas_src>

<mosaic_0001>
module attributes {stable_mosaic.version = 11 : i64} {
  func.func @kernel(%arg0: i32, %arg1: i32, %arg2: memref<3xf32, #tpu.memory_space<smem>>, %arg3: memref<1x4x256xf32, #tpu.memory_space<vmem>>, %arg4: memref<1x4x256xf32, #tpu.memory_space<vmem>>, %arg5: memref<1x4x256xf32, #tpu.memory_space<vmem>>, %arg6: memref<1x12x256xf32, #tpu.memory_space<vmem>>) attributes {dimension_semantics = [#tpu.dimension_semantics<parallel>, #tpu.dimension_semantics<parallel>], iteration_bounds = array<i64: 2, 1>, scalar_prefetch = 0 : i64, scratch_operands = 0 : i64, tpu.core_type = #tpu.core_type<tc>, window_params = [{transform_indices = @transform_0, window_bounds = array<i64: 3>}, {transform_indices = @transform_1, window_bounds = array<i64: 1, 4, 256>}, {transform_indices = @transform_2, window_bounds = array<i64: 1, 4, 256>}, {transform_indices = @transform_3, window_bounds = array<i64: 1, 4, 256>}, {transform_indices = @transform_4, window_bounds = array<i64: 1, 12, 256>}]} {
    %c0 = arith.constant 0 : index
    %0 = memref.load %arg2[%c0] : memref<3xf32, #tpu.memory_space<smem>>
    %c1 = arith.constant 1 : index
    %1 = memref.load %arg2[%c1] : memref<3xf32, #tpu.memory_space<smem>>
    %c2 = arith.constant 2 : index
    %2 = memref.load %arg2[%c2] : memref<3xf32, #tpu.memory_space<smem>>
    %c0_0 = arith.constant 0 : index
    %c0_1 = arith.constant 0 : index
    %c0_2 = arith.constant 0 : index
    %3 = vector.load %arg3[%c0_0, %c0_1, %c0_2] : memref<1x4x256xf32, #tpu.memory_space<vmem>>, vector<1x4x256xf32>
    %4 = vector.shape_cast %3 : vector<1x4x256xf32> to vector<4x256xf32>
    %5 = vector.broadcast %0 : f32 to vector<4x256xf32>
    %6 = arith.mulf %4, %5 : vector<4x256xf32>
    %c0_3 = arith.constant 0 : index
    %c0_4 = arith.constant 0 : index
    %c0_5 = arith.constant 0 : index
    %7 = vector.load %arg4[%c0_3, %c0_4, %c0_5] : memref<1x4x256xf32, #tpu.memory_space<vmem>>, vector<1x4x256xf32>
    %8 = vector.shape_cast %7 : vector<1x4x256xf32> to vector<4x256xf32>
    %9 = vector.broadcast %1 : f32 to vector<4x256xf32>
    %10 = arith.mulf %8, %9 : vector<4x256xf32>
    %c0_6 = arith.constant 0 : index
    %c0_7 = arith.constant 0 : index
    %c0_8 = arith.constant 0 : index
    %11 = vector.load %arg5[%c0_6, %c0_7, %c0_8] : memref<1x4x256xf32, #tpu.memory_space<vmem>>, vector<1x4x256xf32>
    %12 = vector.shape_cast %11 : vector<1x4x256xf32> to vector<4x256xf32>
    %13 = vector.broadcast %2 : f32 to vector<4x256xf32>
    %14 = arith.mulf %12, %13 : vector<4x256xf32>
    %15 = tpu.concatenate %6, %10, %14 in 0 : vector<4x256xf32>, vector<4x256xf32>, vector<4x256xf32> -> vector<12x256xf32>
    %c0_9 = arith.constant 0 : index
    %c0_10 = arith.constant 0 : index
    %c0_11 = arith.constant 0 : index
    %16 = vector.load %arg6[%c0_9, %c0_10, %c0_11] : memref<1x12x256xf32, #tpu.memory_space<vmem>>, vector<1x12x256xf32>
    %17 = vector.shape_cast %16 : vector<1x12x256xf32> to vector<12x256xf32>
    %18 = vector.shape_cast %15 : vector<12x256xf32> to vector<1x12x256xf32>
    tpu.vector_store %arg6[%c0_9, %c0_10, %c0_11], %18 {strides = array<i32>} : memref<1x12x256xf32, #tpu.memory_space<vmem>>, vector<1x12x256xf32>,
    return
  }
  func.func @transform_0(%arg0: i32, %arg1: i32) -> i32 {
    %c0_i32 = arith.constant 0 : i32
    %c0_i32_0 = arith.constant 0 : i32
    return %c0_i32 : i32
  }
  func.func @transform_1(%arg0: i32, %arg1: i32) -> (i32, i32, i32) {
    %c0_i32 = arith.constant 0 : i32
    %c0_i32_0 = arith.constant 0 : i32
    return %arg0, %c0_i32, %arg1 : i32, i32, i32
  }
  func.func @transform_2(%arg0: i32, %arg1: i32) -> (i32, i32, i32) {
    %c0_i32 = arith.constant 0 : i32
    %c0_i32_0 = arith.constant 0 : i32
    return %arg0, %c0_i32, %arg1 : i32, i32, i32
  }
  func.func @transform_3(%arg0: i32, %arg1: i32) -> (i32, i32, i32) {
    %c0_i32 = arith.constant 0 : i32
    %c0_i32_0 = arith.constant 0 : i32
    return %arg0, %c0_i32, %arg1 : i32, i32, i32
  }
  func.func @transform_4(%arg0: i32, %arg1: i32) -> (i32, i32, i32) {
    %c0_i32 = arith.constant 0 : i32
    %c0_i32_0 = arith.constant 0 : i32
    return %arg0, %c0_i32, %arg1 : i32, i32, i32
  }
}

</mosaic_0001>

<llo_original>
// kernel: tpu_custom_call.1
$region0: #{tpu_custom_call.1}
  #allocation0 [shape = 'u32[]', space=smem, size = 0x4, offset = 0x4, fixed_abs, tag = 'smem constant byte address 0x4 - core index']
  #allocation1 [shape = 'u32[72,128]{1,0:T(1,128)}', space=vmem, size = 0x9000, scoped, tag = 'internal scratch']
  %s0 = inlined_call_operand.hbm [shape: f32[3], index: 0, kind: input, shape index: {}]
  %s1 = inlined_call_operand.hbm [shape: f32[2,4,256], index: 1, kind: input, shape index: {}]
  %s2 = inlined_call_operand.hbm [shape: f32[2,4,256], index: 2, kind: input, shape index: {}]
  %s3 = inlined_call_operand.hbm [shape: f32[2,4,256], index: 3, kind: input, shape index: {}]
  %s4 = inlined_call_operand.vmem [shape: f32[2,12,256], index: 4, kind: output, shape index: {}]
  %s5 = sld [smem:[#allocation0]]
  $region65: #{tpu_custom_call.1} parent=0
    _
  %s7 = ssub.s32 1, %s5
  %s8 = scalar_select 0, %s7, %s5
  $region1: #{tpu_custom_call.1} parent=0
    #allocation2 [shape = 'u8[512]{0}', space=smem, size = 0x200, scoped, tag = 'input window, operand 0, single buffered']
    #allocation3 [shape = 's32[2]{0}', space=sflag, size = 0x8, scoped, tag = 'scoped memory for tpu_custom_call.1']
    #allocation4 [shape = 's32[2]{0}', space=sflag, size = 0x8, scoped, tag = 'scoped memory for tpu_custom_call.1']
    #allocation5 [shape = 'u8[8192]{0}', space=vmem, size = 0x2000, scoped, tag = 'input window, operand 1']
    #allocation6 [shape = 'u8[8192]{0}', space=vmem, size = 0x2000, scoped, tag = 'input window, operand 2']
    #allocation7 [shape = 's32[2]{0}', space=sflag, size = 0x8, scoped, tag = 'scoped memory for tpu_custom_call.1']
    #allocation8 [shape = 'u8[8192]{0}', space=vmem, size = 0x2000, scoped, tag = 'input window, operand 3']
    %9 = vsyncpa [#allocation4], 0
    %10 = vsyncpa [#allocation3], 0
    %s11 = scalar_lea.sflag [#allocation3], 1
    %12 = vsyncpa %s11, 0
    %13 = vsyncpa [#allocation7], 0
    %s14 = scalar_lea.sflag [#allocation7], 1
    %15 = vsyncpa %s14, 0
    loop: start=0, step=1, limit=4
    $region2: #{tpu_custom_call.1} parent=1 // loop_pre_header
      _
    $region3: #{tpu_custom_call.1} parent=1 // loop_header
      %s17 = sphi 0, %s21
      %p18 = scmp.ge.s32.totalorder %s17, 4
      %s24 = sphi 0, %s36
      %s25 = sphi 0, %s32
      %s26 = sphi 0, %s24
      %s27 = sphi 0, %s25
      %s28 = sphi 0, %s26
      %s29 = sphi 0, %s27
      %s37 = sphi 0, %s37
      %s39 = sphi 0, %s37
      %s40 = sphi 0, %s39
      %s54 = sphi 0, %s40
      %s62 = sphi 0, %s64
      %s65 = sphi 0, %s62
      %s66 = sphi 0, %s65
      %s82 = sphi 0, %s66
      %s90 = sphi 0, %s92
      %s93 = sphi 0, %s90
      %s94 = sphi 0, %s93
      %s110 = sphi 0, %s94
      %s118 = sphi 0, %s120
      %s121 = sphi 0, %s118
      %s122 = sphi 0, %s121
      %s138 = sphi 0, %s122
      %s146 = sphi 0, %s148
      %s149 = sphi 0, %s146
      %s150 = sphi 0, %s149
      %s166 = sphi 0, %s150
    $region4: #{tpu_custom_call.1} parent=1 // loop_header_branch
      %20 = sbr.rel (%p18) target = $region8
    $region5: #{tpu_custom_call.1} parent=1 // loop_body
      %s22 = ssub.s32 %s17, 1
      %s23 = ssub.s32 %s17, 2
      %s30 = sadd.s32 1, %s25
      %p31 = scmp.ge.s32.totalorder %s30, 1
      %s32 = scalar_select %p31, 0, %s30
      %s33 = sadd.s32 1, %s24
      %s34 = scalar_select %p31, %s33, %s24
      %p35 = scmp.ge.s32.totalorder %s34, 2
      %s36 = scalar_select %p35, 0, %s34
      %s38 = sadd.s32 %s37, 1
      %p41 = scmp.eq.s32.totalorder %s17, 1
      %p42 = scmp.ne.s32.totalorder %s37, %s39
      %p43 = scmp.eq.s32.totalorder %s17, 0
      %p44 = por %p42, %p43
      %p45 = scmp.ne.s32.totalorder %s37, %s39
      %p46 = scmp.eq.s32.totalorder %s22, 1
      %p47 = por %p45, %p46
      %p48 = scmp.ne.s32.totalorder %s39, %s40
      %p49 = scmp.eq.s32.totalorder %s22, 0
      %p50 = por %p48, %p49
      %p51 = scmp.ne.s32.totalorder %s39, %s40
      %p52 = scmp.eq.s32.totalorder %s23, 1
      %p53 = por %p51, %p52
      %p55 = scmp.ne.s32.totalorder %s40, %s54
      %p56 = scmp.eq.s32.totalorder %s23, 0
      %p57 = por %p55, %p56
      %s58 = ssub.s32 %s24, %s36
      %s59 = ssub.s32 %s25, %s32
      %s60 = sor.u32 %s58, %s59
      %p61 = scmp.eq.s32.totalorder %s60, 0
      %s63 = sadd.s32 %s62, 1
      %s64 = scalar_select %p61, %s62, %s63
      %p67 = pneg %p61
      %p68 = scmp.eq.s32.totalorder %s17, 1
      %p69 = por %p67, %p68
      %p70 = scmp.ne.s32.totalorder %s62, %s65
      %p71 = scmp.eq.s32.totalorder %s17, 0
      %p72 = por %p70, %p71
      %p73 = scmp.ne.s32.totalorder %s62, %s65
      %p74 = scmp.eq.s32.totalorder %s22, 1
      %p75 = por %p73, %p74
      %p76 = scmp.ne.s32.totalorder %s65, %s66
      %p77 = scmp.eq.s32.totalorder %s22, 0
      %p78 = por %p76, %p77
      %p79 = scmp.ne.s32.totalorder %s65, %s66
      %p80 = scmp.eq.s32.totalorder %s23, 1
      %p81 = por %p79, %p80
      %p83 = scmp.ne.s32.totalorder %s66, %s82
      %p84 = scmp.eq.s32.totalorder %s23, 0
      %p85 = por %p83, %p84
      %s86 = ssub.s32 %s24, %s36
      %s87 = ssub.s32 %s25, %s32
      %s88 = sor.u32 %s86, %s87
      %p89 = scmp.eq.s32.totalorder %s88, 0
      %s91 = sadd.s32 %s90, 1
      %s92 = scalar_select %p89, %s90, %s91
      %p95 = pneg %p89
      %p96 = scmp.eq.s32.totalorder %s17, 1
      %p97 = por %p95, %p96
      %p98 = scmp.ne.s32.totalorder %s90, %s93
      %p99 = scmp.eq.s32.totalorder %s17, 0
      %p100 = por %p98, %p99
      %p101 = scmp.ne.s32.totalorder %s90, %s93
      %p102 = scmp.eq.s32.totalorder %s22, 1
      %p103 = por %p101, %p102
      %p104 = scmp.ne.s32.totalorder %s93, %s94
      %p105 = scmp.eq.s32.totalorder %s22, 0
      %p106 = por %p104, %p105
      %p107 = scmp.ne.s32.totalorder %s93, %s94
      %p108 = scmp.eq.s32.totalorder %s23, 1
      %p109 = por %p107, %p108
      %p111 = scmp.ne.s32.totalorder %s94, %s110
      %p112 = scmp.eq.s32.totalorder %s23, 0
      %p113 = por %p111, %p112
      %s114 = ssub.s32 %s24, %s36
      %s115 = ssub.s32 %s25, %s32
      %s116 = sor.u32 %s114, %s115
      %p117 = scmp.eq.s32.totalorder %s116, 0
      %s119 = sadd.s32 %s118, 1
      %s120 = scalar_select %p117, %s118, %s119
      %p123 = pneg %p117
      %p124 = scmp.eq.s32.totalorder %s17, 1
      %p125 = por %p123, %p124
      %p126 = scmp.ne.s32.totalorder %s118, %s121
      %p127 = scmp.eq.s32.totalorder %s17, 0
      %p128 = por %p126, %p127
      %p129 = scmp.ne.s32.totalorder %s118, %s121
      %p130 = scmp.eq.s32.totalorder %s22, 1
      %p131 = por %p129, %p130
      %p132 = scmp.ne.s32.totalorder %s121, %s122
      %p133 = scmp.eq.s32.totalorder %s22, 0
      %p134 = por %p132, %p133
      %p135 = scmp.ne.s32.totalorder %s121, %s122
      %p136 = scmp.eq.s32.totalorder %s23, 1
      %p137 = por %p135, %p136
      %p139 = scmp.ne.s32.totalorder %s122, %s138
      %p140 = scmp.eq.s32.totalorder %s23, 0
      %p141 = por %p139, %p140
      %s142 = ssub.s32 %s24, %s36
      %s143 = ssub.s32 %s25, %s32
      %s144 = sor.u32 %s142, %s143
      %p145 = scmp.eq.s32.totalorder %s144, 0
      %s147 = sadd.s32 %s146, 1
      %s148 = scalar_select %p145, %s146, %s147
      %p151 = pneg %p145
      %p152 = scmp.eq.s32.totalorder %s17, 1
      %p153 = por %p151, %p152
      %p154 = scmp.ne.s32.totalorder %s146, %s149
      %p155 = scmp.eq.s32.totalorder %s17, 0
      %p156 = por %p154, %p155
      %p157 = scmp.ne.s32.totalorder %s146, %s149
      %p158 = scmp.eq.s32.totalorder %s22, 1
      %p159 = por %p157, %p158
      %p160 = scmp.ne.s32.totalorder %s149, %s150
      %p161 = scmp.eq.s32.totalorder %s22, 0
      %p162 = por %p160, %p161
      %p163 = scmp.ne.s32.totalorder %s149, %s150
      %p164 = scmp.eq.s32.totalorder %s23, 1
      %p165 = por %p163, %p164
      %p167 = scmp.ne.s32.totalorder %s150, %s166
      %p168 = scmp.eq.s32.totalorder %s23, 0
      %p169 = por %p167, %p168
      %p170 = scmp.le.s32.totalorder 1, %s17
      %p171 = scmp.lt.s32.totalorder %s17, 3
      %p172 = pnand %p170, %p171
      %p173 = pneg %p172
      // Predicated region
      $region9: #{tpu_custom_call.1} parent=5 // pred_check
        _
      $region10: #{tpu_custom_call.1} parent=5 // pred_check_branch
        %175 = sbr.rel (%p172) target = $region12
      $region11: #{tpu_custom_call.1} parent=5 // pred_region
        %s176 = ssub.s32 %s17, 1
        // Predicated region
        $region13: #{tpu_custom_call.1} parent=11 // pred_check
          %p177 = pneg %p50
        $region14: #{tpu_custom_call.1} parent=11 // pred_check_branch
          %179 = sbr.rel (%p177) target = $region16
        $region15: #{tpu_custom_call.1} parent=11 // pred_region
          %181 = vsyncadd [#allocation4], 0
          %s183 = sshll.u32 %s0, 4
          %s184 = int_to_ptr.hbm [resolvable:$true] %s183
          %186 = dma.hbm_to_smem %s184, 16, [#allocation2], [#allocation4]
        $region16: #{tpu_custom_call.1} parent=11 // pred_fallthru
          _
      $region12: #{tpu_custom_call.1} parent=5 // pred_fallthru
        _
      %p187 = scmp.lt.s32.totalorder %s17, 2
      // Predicated region
      $region17: #{tpu_custom_call.1} parent=5 // pred_check
        %p188 = pneg %p187
      $region18: #{tpu_custom_call.1} parent=5 // pred_check_branch
        %190 = sbr.rel (%p188) target = $region20
      $region19: #{tpu_custom_call.1} parent=5 // pred_region
        // Predicated region
        $region21: #{tpu_custom_call.1} parent=19 // pred_check
          %p191 = pneg %p72
        $region22: #{tpu_custom_call.1} parent=19 // pred_check_branch
          %193 = sbr.rel (%p191) target = $region24
        $region23: #{tpu_custom_call.1} parent=19 // pred_region
          %s194 = sand.u32 %s62, 1
          %s195 = scalar_lea.sflag [#allocation3], %s194
          %s196 = sand.u32 %s62, 1
          %s197 = smul.addr %s196, 8
          %s198 = scalar_lea.vmem [#allocation5], %s197
          %s199 = smul.u32 2, %s25
          %201 = vsyncadd %s195, 0
          %s202 = smul.addr %s24, 2
          %s203 = sadd.s32 %s199, %s202
          %s204 = smul.addr %s203, 4
          %s205 = scalar_lea.hbm %s1, %s204
          %s207 = sshll.u32 %s205, 4
          %s208 = int_to_ptr.hbm [resolvable:$true] %s207
          %s209 = sshll.u32 %s198, 4
          %s210 = int_to_ptr.vmem [resolvable:$true] %s209
          %212 = dma.hbm_to_vmem [thread:$0]  %s208, 128, %s210, %s195
        $region24: #{tpu_custom_call.1} parent=19 // pred_fallthru
          _
        // Predicated region
        $region25: #{tpu_custom_call.1} parent=19 // pred_check
          %p213 = pneg %p100
        $region26: #{tpu_custom_call.1} parent=19 // pred_check_branch
          %215 = sbr.rel (%p213) target = $region28
        $region27: #{tpu_custom_call.1} parent=19 // pred_region
          %s216 = sand.u32 %s17, 1
          %s217 = scalar_lea.sflag [#allocation7], %s216
          %s218 = sand.u32 %s90, 1
          %s219 = smul.addr %s218, 8
          %s220 = scalar_lea.vmem [#allocation6], %s219
          %s221 = smul.u32 2, %s25
          %223 = vsyncadd %s217, 0
          %s224 = smul.addr %s24, 2
          %s225 = sadd.s32 %s221, %s224
          %s226 = smul.addr %s225, 4
          %s227 = scalar_lea.hbm %s2, %s226
          %s229 = sshll.u32 %s227, 4
          %s230 = int_to_ptr.hbm [resolvable:$true] %s229
          %s231 = sshll.u32 %s220, 4
          %s232 = int_to_ptr.vmem [resolvable:$true] %s231
          %234 = dma.hbm_to_vmem [thread:$0]  %s230, 128, %s232, %s217
        $region28: #{tpu_custom_call.1} parent=19 // pred_fallthru
          _
        // Predicated region
        $region29: #{tpu_custom_call.1} parent=19 // pred_check
          %p235 = pneg %p128
        $region30: #{tpu_custom_call.1} parent=19 // pred_check_branch
          %237 = sbr.rel (%p235) target = $region32
        $region31: #{tpu_custom_call.1} parent=19 // pred_region
          %s238 = sand.u32 %s17, 1
          %s239 = scalar_lea.sflag [#allocation7], %s238
          %s240 = sand.u32 %s118, 1
          %s241 = smul.addr %s240, 8
          %s242 = scalar_lea.vmem [#allocation8], %s241
          %s243 = smul.u32 2, %s25
          %245 = vsyncadd %s239, 0
          %s246 = smul.addr %s24, 2
          %s247 = sadd.s32 %s243, %s246
          %s248 = smul.addr %s247, 4
          %s249 = scalar_lea.hbm %s3, %s248
          %s251 = sshll.u32 %s249, 4
          %s252 = int_to_ptr.hbm [resolvable:$true] %s251
          %s253 = sshll.u32 %s242, 4
          %s254 = int_to_ptr.vmem [resolvable:$true] %s253
          %256 = dma.hbm_to_vmem [thread:$0]  %s252, 128, %s254, %s239
        $region32: #{tpu_custom_call.1} parent=19 // pred_fallthru
          _
      $region20: #{tpu_custom_call.1} parent=5 // pred_fallthru
        _
      %p257 = scmp.le.s32.totalorder 1, %s17
      %p258 = scmp.lt.s32.totalorder %s17, 3
      %p259 = pnand %p257, %p258
      %p260 = pneg %p259
      // Predicated region
      $region33: #{tpu_custom_call.1} parent=5 // pred_check
        _
      $region34: #{tpu_custom_call.1} parent=5 // pred_check_branch
        %262 = sbr.rel (%p259) target = $region36
      $region35: #{tpu_custom_call.1} parent=5 // pred_region
        %s263 = ssub.s32 %s17, 1
        // Predicated region
        $region37: #{tpu_custom_call.1} parent=35 // pred_check
          %p264 = pneg %p50
        $region38: #{tpu_custom_call.1} parent=35 // pred_check_branch
          %266 = sbr.rel (%p264) target = $region40
        $region39: #{tpu_custom_call.1} parent=35 // pred_region
          %268 = dma.done [#allocation4], 16
        $region40: #{tpu_custom_call.1} parent=35 // pred_fallthru
          _
        %s269 = sand.u32 %s65, 1
        %s270 = scalar_lea.sflag [#allocation3], %s269
        %s271 = sand.u32 %s65, 1
        %s272 = smul.addr %s271, 8
        %s273 = scalar_lea.vmem [#allocation5], %s272
        // Predicated region
        $region41: #{tpu_custom_call.1} parent=35 // pred_check
          %p274 = pneg %p78
        $region42: #{tpu_custom_call.1} parent=35 // pred_check_branch
          %276 = sbr.rel (%p274) target = $region44
        $region43: #{tpu_custom_call.1} parent=35 // pred_region
          %278 = dma.done %s270, 128
        $region44: #{tpu_custom_call.1} parent=35 // pred_fallthru
          _
        %s279 = sand.u32 %s22, 1
        %s280 = scalar_lea.sflag [#allocation7], %s279
        %s281 = sand.u32 %s93, 1
        %s282 = smul.addr %s281, 8
        %s283 = scalar_lea.vmem [#allocation6], %s282
        // Predicated region
        $region45: #{tpu_custom_call.1} parent=35 // pred_check
          %p284 = pneg %p106
        $region46: #{tpu_custom_call.1} parent=35 // pred_check_branch
          %286 = sbr.rel (%p284) target = $region48
        $region47: #{tpu_custom_call.1} parent=35 // pred_region
          %288 = dma.done %s280, 128
        $region48: #{tpu_custom_call.1} parent=35 // pred_fallthru
          _
        %s289 = sand.u32 %s22, 1
        %s290 = scalar_lea.sflag [#allocation7], %s289
        %s291 = sand.u32 %s121, 1
        %s292 = smul.addr %s291, 8
        %s293 = scalar_lea.vmem [#allocation8], %s292
        // Predicated region
        $region49: #{tpu_custom_call.1} parent=35 // pred_check
          %p294 = pneg %p134
        $region50: #{tpu_custom_call.1} parent=35 // pred_check_branch
          %296 = sbr.rel (%p294) target = $region52
        $region51: #{tpu_custom_call.1} parent=35 // pred_region
          %298 = dma.done %s290, 128
        $region52: #{tpu_custom_call.1} parent=35 // pred_fallthru
          _
        %299 = sfence
        %p300 = pneg %p50
        %p301 = pneg %p47
        %s302 = sand.u32 %s65, 1
        %s303 = scalar_lea.sflag [#allocation3], %s302
        %s304 = sand.u32 %s65, 1
        %s305 = smul.addr %s304, 8
        %s306 = scalar_lea.vmem [#allocation5], %s305
        %p307 = pneg %p78
        %p308 = pneg %p75
        %s309 = sand.u32 %s22, 1
        %s310 = scalar_lea.sflag [#allocation7], %s309
        %s311 = sand.u32 %s93, 1
        %s312 = smul.addr %s311, 8
        %s313 = scalar_lea.vmem [#allocation6], %s312
        %p314 = pneg %p106
        %p315 = pneg %p103
        %s316 = sand.u32 %s22, 1
        %s317 = scalar_lea.sflag [#allocation7], %s316
        %s318 = sand.u32 %s121, 1
        %s319 = smul.addr %s318, 8
        %s320 = scalar_lea.vmem [#allocation8], %s319
        %p321 = pneg %p134
        %p322 = pneg %p131
        %p323 = pneg %p162
        %p324 = pneg %p159
        %s325 = smul.u32 2, %s27
        %p326 = scmp.lt.s32.totalorder %s26, 1
        %s327 = scalar_select %p326, %s26, 1
        %p328 = scmp.lt.s32.totalorder %s325, 1
        %s329 = scalar_select %p328, %s325, 1
        %s330 = smul.addr %s327, 4
        %s331 = sadd.s32 %s329, %s330
        %s332 = smul.addr %s331, 8
        %s333 = scalar_lea.vmem %s4, %s332
        %s334 = smul.u32 2, %s27
        %s335 = smul.u32 2, %s27
        %s336 = smul.u32 2, %s27
        %s337 = smul.u32 2, %s27
        %p338 = scmp.lt.s32.totalorder %s26, 1
        %s339 = scalar_select %p338, %s26, 1
        %p340 = scmp.lt.s32.totalorder %s337, 1
        %s341 = scalar_select %p340, %s337, 1
        %s342 = smul.addr %s339, 4
        %s343 = sadd.s32 %s341, %s342
        %s344 = smul.addr %s343, 8
        %s345 = scalar_lea.vmem %s4, %s344
        %s346 = smul.u32 2, %s27
        %s347 = sld [smem:[#allocation2]]
        %s348 = sld [smem:[#allocation2 + $0x1]]
        %s349 = sld [smem:[#allocation2 + $0x2]]
        %v350 = vld [vmem:[%s273] sm:$0xff]
        %v351 = vstv %s347
        %v352 = vmul.f32 %v350, %v351
        %v353 = vld [vmem:[%s283] sm:$0xff]
        %v354 = vstv %s348
        %v355 = vmul.f32 %v353, %v354
        %v356 = vld [vmem:[%s293] sm:$0xff]
        %v357 = vstv %s349
        %v358 = vmul.f32 %v356, %v357
        %360 = vst [vmem:[#allocation1] ss:$2 sm:$0xff] %v352
        %v361 = vld.sshfl [vmem:[#allocation1] sm:$0xff pattern:$0x75316420]
        %v362 = vld.sshfl [vmem:[#allocation1 + $0x8] sm:$0xff pattern:$0x75316420]
        %s366 = scalar_lea.vmem [#allocation1], 1
        %367 = vst [vmem:[%s366] ss:$2 sm:$0xff] %v355
        %v368 = vld.sshfl [vmem:[#allocation1] sm:$0xff pattern:$0x75316420]
        %v369 = vld.sshfl [vmem:[#allocation1 + $0x8] sm:$0xff pattern:$0x75316420]
        %373 = vst [vmem:[#allocation1] ss:$2 sm:$0xff] %v358
        %v374 = vld.sshfl [vmem:[#allocation1] sm:$0xff pattern:$0x75316420]
        %v375 = vld.sshfl [vmem:[#allocation1 + $0x8] sm:$0xff pattern:$0x75316420]
        %vm378 = vcmask 1043456
        %v379 = vsel %vm378, %v361, %v368
        %v380 = vsel %vm378, %v362, %v369
        %381 = vst [vmem:[%s345] sm:$0xff] %v379
        %382 = vst [vmem:[%s345 + $0x8] sm:$0xff] %v380
        %383 = vst [vmem:[%s345 + $0x10] sm:$0xf] %v374
        %384 = vst [vmem:[%s345 + $0x18] sm:$0xf] %v375
        %s385 = smul.u32 2, %s27
        %p386 = scmp.lt.s32.totalorder %s26, 1
        %s387 = scalar_select %p386, %s26, 1
        %p388 = scmp.lt.s32.totalorder %s385, 1
        %s389 = scalar_select %p388, %s385, 1
        %s390 = smul.addr %s387, 4
        %s391 = sadd.s32 %s389, %s390
        %s392 = smul.addr %s391, 8
        %s393 = scalar_lea.vmem %s4, %s392
        // Predicated region
        $region53: #{tpu_custom_call.1} parent=35 // pred_check
          %p394 = pneg %p159
        $region54: #{tpu_custom_call.1} parent=35 // pred_check_branch
          %396 = sbr.rel (%p394) target = $region56
        $region55: #{tpu_custom_call.1} parent=35 // pred_region
          %s397 = smul.u32 2, %s27
        $region56: #{tpu_custom_call.1} parent=35 // pred_fallthru
          _
      $region36: #{tpu_custom_call.1} parent=5 // pred_fallthru
        _
      %p398 = scmp.le.s32.totalorder 2, %s17
      // Predicated region
      $region57: #{tpu_custom_call.1} parent=5 // pred_check
        %p399 = pneg %p398
      $region58: #{tpu_custom_call.1} parent=5 // pred_check_branch
        %401 = sbr.rel (%p399) target = $region60
      $region59: #{tpu_custom_call.1} parent=5 // pred_region
        %s402 = ssub.s32 %s17, 2
        // Predicated region
        $region61: #{tpu_custom_call.1} parent=59 // pred_check
          %p403 = pneg %p165
        $region62: #{tpu_custom_call.1} parent=59 // pred_check_branch
          %405 = sbr.rel (%p403) target = $region64
        $region63: #{tpu_custom_call.1} parent=59 // pred_region
          %s406 = smul.u32 2, %s29
          %p407 = scmp.lt.s32.totalorder %s28, 1
          %s408 = scalar_select %p407, %s28, 1
          %p409 = scmp.lt.s32.totalorder %s406, 1
          %s410 = scalar_select %p409, %s406, 1
          %s411 = smul.addr %s408, 4
          %s412 = sadd.s32 %s410, %s411
          %s413 = smul.addr %s412, 8
          %s414 = scalar_lea.vmem %s4, %s413
        $region64: #{tpu_custom_call.1} parent=59 // pred_fallthru
          _
      $region60: #{tpu_custom_call.1} parent=5 // pred_fallthru
        _
    $region6: #{tpu_custom_call.1} parent=1 // loop_footer
      %s21 = sadd.s32 1, %s17
    $region7: #{tpu_custom_call.1} parent=1 // loop_footer_branch
      %16 = sbr.rel target = $region3
    $region8: #{tpu_custom_call.1} parent=1 // loop_exit
      _
    %415 = vsyncpa [#allocation3], 1
    %s416 = scalar_lea.sflag [#allocation3], 1
    %417 = vsyncpa %s416, 1
    %418 = vsyncpa [#allocation7], 1
    %s419 = scalar_lea.sflag [#allocation7], 1
    %420 = vsyncpa %s419, 1
    %421 = vsyncpa [#allocation4], 1
    %s422 = scalar_lea.sflag [#allocation4], 1
    %423 = vsyncpa %s422, 1

</llo_original>
